<compile_context>
chip_gen: v6e
topology: v6e:2x2x1
jax: 0.10.0
libtpu: 0.0.40
codegen_flags: <defaults>
</compile_context>

<pallas_src>
import math

import numpy as np
import jax
import jax.numpy as jnp
from jax.experimental import pallas as pl
from jax.experimental.pallas import tpu as pltpu

# Static module hyper-parameters.
D_INPUT_Q = 32
D_INPUT_KV = 24
D_MODEL = 16
N_HEAD = 4
D_OUT = N_HEAD * D_MODEL          # 64
N_SCORES = N_HEAD * N_HEAD        # 16 head-pair scores per row
MAX_TILE = 1024                   # rows per grid step (sweep 1024/2048 if desired)


def _round_up(x, m):
    return ((x + m - 1) // m) * m


def _head_roll(x, j):
    """Rotate the N_HEAD 16-lane head blocks of x by j positions.

    Implemented with static lane slices + concat (guaranteed Mosaic lowering);
    pltpu.roll(x, 16*j, axis=1) is the alternative.
    """
    if j == 0:
        return x
    s = j * D_MODEL
    return jnp.concatenate([x[:, s:], x[:, :s]], axis=1)


def _crosa_kernel(xq_ref, xkv_ref, wq_ref, wkv_ref, bq_ref, bkv_ref,
                  sred_ref, bcast_ref, o_ref):
    """One tile of independent encoder rows (batch on sublanes, features on lanes)."""
    # --- projections: bf16 operands on the MXU, f32 accumulation -------------
    xq = xq_ref[...].astype(jnp.bfloat16)                     # (T, 32)
    xkv = xkv_ref[...].astype(jnp.bfloat16)                   # (T, 24)
    q = jnp.dot(xq, wq_ref[...],
                preferred_element_type=jnp.float32) + bq_ref[...]     # (T, 64)
    kv = jnp.dot(xkv, wkv_ref[...],
                 preferred_element_type=jnp.float32) + bkv_ref[...]   # (T, 128)
    k = kv[:, :D_OUT]                                         # (T, 64)
    v = jnp.maximum(kv[:, D_OUT:], 0.0)                       # relu(v), (T, 64)

    tile = q.shape[0]
    sred = sred_ref[...]                                      # (64, 64) bf16 const
    bcast = bcast_ref[...]                                    # (16, 256) bf16 const

    # --- all 16 head-pair scores in one lane-dense (T, 16) array -------------
    # Column h*4 + j holds <q_h, k_{(h+j)%4}>  (1/sqrt(d_model) folded into wq).
    scores = jnp.zeros((tile, N_SCORES), jnp.float32)
    for j in range(N_HEAD):
        prod = (q * _head_roll(k, j)).astype(jnp.bfloat16)    # (T, 64)
        scores = scores + jnp.dot(
            prod, sred[:, j * N_SCORES:(j + 1) * N_SCORES],
            preferred_element_type=jnp.float32)               # per-head sums

    # --- softmax over each head's 4 scores: one max, one exp -----------------
    m = jnp.max(scores, axis=-1, keepdims=True)               # row-global shift
    e = jnp.exp(scores - m).astype(jnp.bfloat16)              # (T, 16)

    # --- weighted sum of relu(v) heads: 4 iterations on (T, 64) --------------
    acc = jnp.zeros((tile, D_OUT), jnp.float32)
    den = jnp.zeros((tile, D_OUT), jnp.float32)
    for j in range(N_HEAD):
        # e column h*4+j broadcast across head h's 16 lanes, via constant matmul.
        ej = jnp.dot(e, bcast[:, j * D_OUT:(j + 1) * D_OUT],
                     preferred_element_type=jnp.float32)      # (T, 64)
        acc = acc + ej * _head_roll(v, j)
        den = den + ej                                        # per-head denominators

    out = acc * pl.reciprocal(den, approx=True)               # softmax norm (EUP)
    o_ref[...] = jnp.maximum(out, 0.0).astype(o_ref.dtype)    # func == 'relu'


@jax.jit
def crosa_encoder(q_vec, kv_vec, packed):
    """Batched CroSAEncoder forward.

    q_vec:  (B, 32), kv_vec: (B, 24)  -- B independent encoder instances
    packed: dict from pack_params()
    returns (B, 64) float32
    """
    B = q_vec.shape[0]
    tile = min(MAX_TILE, _round_up(B, 8))
    b_pad = _round_up(B, tile)

    xq = q_vec.astype(jnp.float32)
    xkv = kv_vec.astype(jnp.float32)
    if b_pad != B:   # only when B is not tile-aligned; zero rows are benign.
        xq = jnp.pad(xq, ((0, b_pad - B), (0, 0)))
        xkv = jnp.pad(xkv, ((0, b_pad - B), (0, 0)))

    out = pl.pallas_call(
        _crosa_kernel,
        out_shape=jax.ShapeDtypeStruct((b_pad, D_OUT), jnp.float32),
        grid=(b_pad // tile,),
        in_specs=[
            pl.BlockSpec((tile, D_INPUT_Q), lambda i: (i, 0)),
            pl.BlockSpec((tile, D_INPUT_KV), lambda i: (i, 0)),
            pl.BlockSpec((D_INPUT_Q, D_OUT), lambda i: (0, 0)),       # wq (resident)
            pl.BlockSpec((D_INPUT_KV, 2 * D_OUT), lambda i: (0, 0)),  # wkv
            pl.BlockSpec((1, D_OUT), lambda i: (0, 0)),               # bq
            pl.BlockSpec((1, 2 * D_OUT), lambda i: (0, 0)),           # bkv
            pl.BlockSpec((D_OUT, N_HEAD * N_SCORES), lambda i: (0, 0)),   # sred
            pl.BlockSpec((N_SCORES, N_HEAD * D_OUT), lambda i: (0, 0)),   # bcast
        ],
        out_specs=pl.BlockSpec((tile, D_OUT), lambda i: (i, 0)),
        compiler_params=pltpu.CompilerParams(
            dimension_semantics=("parallel",),
            vmem_limit_bytes=32 * 1024 * 1024),
    )(xq, xkv, packed["wq"], packed["wkv"], packed["bq"], packed["bkv"],
      packed["sred"], packed["bcast"])
    return out[:B]


def _init_params(key):
    """Deterministic nn.Linear-style init; weights stored (in_features, out_features)."""
    ks = jax.random.split(key, 6)

    def lin(kw, kb, fan_in, fan_out):
        bound = 1.0 / math.sqrt(fan_in)
        w = jax.random.uniform(kw, (fan_in, fan_out), jnp.float32, -bound, bound)
        b = jax.random.uniform(kb, (fan_out,), jnp.float32, -bound, bound)
        return w, b

    wq, bq = lin(ks[0], ks[1], D_INPUT_Q, D_OUT)
    wk, bk = lin(ks[2], ks[3], D_INPUT_KV, D_OUT)
    wv, bv = lin(ks[4], ks[5], D_INPUT_KV, D_OUT)
    return dict(wq=wq, bq=bq, wk=wk, bk=bk, wv=wv, bv=bv)


def pack_params(p):
    """Offline packing: bf16 fused weights (+ folded 1/sqrt(d) scale) and the
    constant reduce / broadcast matrices used by the vectorized epilogue."""
    inv_sqrt_d = 1.0 / math.sqrt(D_MODEL)
    wq = jnp.asarray(p["wq"] * inv_sqrt_d, jnp.bfloat16)                 # (32, 64)
    wkv = jnp.asarray(jnp.concatenate([p["wk"], p["wv"]], axis=1),
                      jnp.bfloat16)                                      # (24, 128)
    bq = jnp.asarray(p["bq"] * inv_sqrt_d, jnp.float32).reshape(1, D_OUT)
    bkv = jnp.concatenate([p["bk"], p["bv"]]).astype(jnp.float32).reshape(1, 2 * D_OUT)

    # sred block j: (64,16) with a 1 at [h*16+d, h*4+j]  -> per-head dot-product sums.
    # bcast block j: (16,64) with a 1 at [h*4+j, h*16+d] -> broadcast e across lanes.
    sred = np.zeros((D_OUT, N_HEAD * N_SCORES), np.float32)
    bcast = np.zeros((N_SCORES, N_HEAD * D_OUT), np.float32)
    for j in range(N_HEAD):
        for h in range(N_HEAD):
            c = h * N_HEAD + j
            sred[h * D_MODEL:(h + 1) * D_MODEL, j * N_SCORES + c] = 1.0
            bcast[c, j * D_OUT + h * D_MODEL: j * D_OUT + (h + 1) * D_MODEL] = 1.0

    return dict(wq=wq, wkv=wkv, bq=bq, bkv=bkv,
                sred=jnp.asarray(sred, jnp.bfloat16),
                bcast=jnp.asarray(bcast, jnp.bfloat16))


def _reference(q_vec, kv_vec, p):
    """Pure-JAX f32 reference (original unfused math, highest matmul precision)."""
    hp = jax.lax.Precision.HIGHEST
    B = q_vec.shape[0]
    q = (jnp.dot(q_vec, p["wq"], precision=hp) + p["bq"]).reshape(B, N_HEAD, D_MODEL)
    k = (jnp.dot(kv_vec, p["wk"], precision=hp) + p["bk"]).reshape(B, N_HEAD, D_MODEL)
    v = jnp.maximum(
        (jnp.dot(kv_vec, p["wv"], precision=hp) + p["bv"]).reshape(B, N_HEAD, D_MODEL),
        0.0)
    score = jax.nn.softmax(
        jnp.einsum("bhd,bgd->bhg", q, k, precision=hp) / math.sqrt(D_MODEL), axis=-1)
    out = jnp.einsum("bhg,bgd->bhd", score, v, precision=hp).reshape(B, D_OUT)
    return jnp.maximum(out, 0.0)


if __name__ == "__main__":
    key = jax.random.PRNGKey(0)
    k_p, k_q, k_kv = jax.random.split(key, 3)

    params = _init_params(k_p)
    packed = pack_params(params)

    # Small batch of independent encoder instances.
    B = 16
    q_vec = jax.random.normal(k_q, (B, D_INPUT_Q), jnp.float32)
    kv_vec = jax.random.normal(k_kv, (B, D_INPUT_KV), jnp.float32)

    out = jax.block_until_ready(crosa_encoder(q_vec, kv_vec, packed))
    ref = _reference(q_vec, kv_vec, params)
    assert out.shape == (B, D_OUT)
    # Tolerance covers bf16 MXU operands + the EUP approximate reciprocal.
    assert jnp.allclose(out, ref, atol=2e-2, rtol=2e-2), "mismatch vs reference (small B)"

    # Exercise the multi-tile grid + batch-padding path as well.
    B2 = 2500
    k_q2, k_kv2 = jax.random.split(k_q)
    q2 = jax.random.normal(k_q2, (B2, D_INPUT_Q), jnp.float32)
    kv2 = jax.random.normal(k_kv2, (B2, D_INPUT_KV), jnp.float32)
    out2 = jax.block_until_ready(crosa_encoder(q2, kv2, packed))
    ref2 = _reference(q2, kv2, params)
    assert out2.shape == (B2, D_OUT)
    assert jnp.allclose(out2, ref2, atol=2e-2, rtol=2e-2), "mismatch vs reference (large B)"

    print("KERNEL_OK")
</pallas_src>

<mosaic_0001>
module attributes {stable_mosaic.version = 11 : i64} {
  func.func @_crosa_kernel(%arg0: i32, %arg1: memref<16x32xf32, #tpu.memory_space<vmem>>, %arg2: memref<16x24xf32, #tpu.memory_space<vmem>>, %arg3: memref<32x64xbf16, #tpu.memory_space<vmem>>, %arg4: memref<24x128xbf16, #tpu.memory_space<vmem>>, %arg5: memref<1x64xf32, #tpu.memory_space<vmem>>, %arg6: memref<1x128xf32, #tpu.memory_space<vmem>>, %arg7: memref<64x64xbf16, #tpu.memory_space<vmem>>, %arg8: memref<16x256xbf16, #tpu.memory_space<vmem>>, %arg9: memref<16x64xf32, #tpu.memory_space<vmem>>) attributes {dimension_semantics = [#tpu.dimension_semantics<parallel>], iteration_bounds = array<i64: 1>, scalar_prefetch = 0 : i64, scratch_operands = 0 : i64, tpu.core_type = #tpu.core_type<tc>, window_params = [{transform_indices = @transform_0, window_bounds = array<i64: 16, 32>}, {transform_indices = @transform_1, window_bounds = array<i64: 16, 24>}, {pipeline_mode = #tpu.pipeline_mode<synchronous>, transform_indices = @transform_2, window_bounds = array<i64: 32, 64>}, {pipeline_mode = #tpu.pipeline_mode<synchronous>, transform_indices = @transform_3, window_bounds = array<i64: 24, 128>}, {pipeline_mode = #tpu.pipeline_mode<synchronous>, transform_indices = @transform_4, window_bounds = array<i64: 1, 64>}, {pipeline_mode = #tpu.pipeline_mode<synchronous>, transform_indices = @transform_5, window_bounds = array<i64: 1, 128>}, {pipeline_mode = #tpu.pipeline_mode<synchronous>, transform_indices = @transform_6, window_bounds = array<i64: 64, 64>}, {pipeline_mode = #tpu.pipeline_mode<synchronous>, transform_indices = @transform_7, window_bounds = array<i64: 16, 256>}, {transform_indices = @transform_8, window_bounds = array<i64: 16, 64>}]} {
    %c0 = arith.constant 0 : index
    %c0_0 = arith.constant 0 : index
    %0 = vector.load %arg1[%c0, %c0_0] : memref<16x32xf32, #tpu.memory_space<vmem>>, vector<16x32xf32>
    %1 = arith.truncf %0 : vector<16x32xf32> to vector<16x32xbf16>
    %c0_1 = arith.constant 0 : index
    %c0_2 = arith.constant 0 : index
    %2 = vector.load %arg2[%c0_1, %c0_2] : memref<16x24xf32, #tpu.memory_space<vmem>>, vector<16x24xf32>
    %3 = arith.truncf %2 : vector<16x24xf32> to vector<16x24xbf16>
    %c0_3 = arith.constant 0 : index
    %c0_4 = arith.constant 0 : index
    %4 = vector.load %arg3[%c0_3, %c0_4] : memref<32x64xbf16, #tpu.memory_space<vmem>>, vector<32x64xbf16>
    %cst = arith.constant dense<0.000000e+00> : vector<16x64xf32>
    %5 = tpu.matmul %1, %4, %cst {dimension_numbers = #tpu.dot_dimension_numbers<[1], [0], [0], [1], [0, 0, 1, 1], [], []>} : vector<16x32xbf16>, vector<32x64xbf16>, vector<16x64xf32> -> vector<16x64xf32>
    %c0_5 = arith.constant 0 : index
    %c0_6 = arith.constant 0 : index
    %6 = vector.load %arg5[%c0_5, %c0_6] : memref<1x64xf32, #tpu.memory_space<vmem>>, vector<1x64xf32>
    %7 = vector.broadcast %6 : vector<1x64xf32> to vector<16x64xf32>
    %8 = arith.addf %5, %7 : vector<16x64xf32>
    %c0_7 = arith.constant 0 : index
    %c0_8 = arith.constant 0 : index
    %9 = vector.load %arg4[%c0_7, %c0_8] : memref<24x128xbf16, #tpu.memory_space<vmem>>, vector<24x128xbf16>
    %cst_9 = arith.constant dense<0.000000e+00> : vector<16x128xf32>
    %10 = tpu.matmul %3, %9, %cst_9 {dimension_numbers = #tpu.dot_dimension_numbers<[1], [0], [0], [1], [0, 0, 1, 1], [], []>} : vector<16x24xbf16>, vector<24x128xbf16>, vector<16x128xf32> -> vector<16x128xf32>
    %c0_10 = arith.constant 0 : index
    %c0_11 = arith.constant 0 : index
    %11 = vector.load %arg6[%c0_10, %c0_11] : memref<1x128xf32, #tpu.memory_space<vmem>>, vector<1x128xf32>
    %12 = vector.broadcast %11 : vector<1x128xf32> to vector<16x128xf32>
    %13 = arith.addf %10, %12 : vector<16x128xf32>
    %14 = vector.extract_strided_slice %13 {offsets = [0, 0], sizes = [16, 64], strides = [1, 1]} : vector<16x128xf32> to vector<16x64xf32>
    %15 = vector.extract_strided_slice %13 {offsets = [0, 64], sizes = [16, 64], strides = [1, 1]} : vector<16x128xf32> to vector<16x64xf32>
    %cst_12 = arith.constant 0.000000e+00 : f32
    %16 = vector.broadcast %cst_12 : f32 to vector<16x64xf32>
    %17 = arith.maximumf %15, %16 : vector<16x64xf32>
    %c0_13 = arith.constant 0 : index
    %c0_14 = arith.constant 0 : index
    %18 = vector.load %arg7[%c0_13, %c0_14] : memref<64x64xbf16, #tpu.memory_space<vmem>>, vector<64x64xbf16>
    %c0_15 = arith.constant 0 : index
    %c0_16 = arith.constant 0 : index
    %19 = vector.load %arg8[%c0_15, %c0_16] : memref<16x256xbf16, #tpu.memory_space<vmem>>, vector<16x256xbf16>
    %cst_17 = arith.constant 0.000000e+00 : f32
    %20 = vector.broadcast %cst_17 : f32 to vector<16x16xf32>
    %21 = arith.mulf %8, %14 : vector<16x64xf32>
    %22 = arith.truncf %21 : vector<16x64xf32> to vector<16x64xbf16>
    %23 = vector.extract_strided_slice %18 {offsets = [0, 0], sizes = [64, 16], strides = [1, 1]} : vector<64x64xbf16> to vector<64x16xbf16>
    %cst_18 = arith.constant dense<0.000000e+00> : vector<16x16xf32>
    %24 = tpu.matmul %22, %23, %cst_18 {dimension_numbers = #tpu.dot_dimension_numbers<[1], [0], [0], [1], [0, 0, 1, 1], [], []>} : vector<16x64xbf16>, vector<64x16xbf16>, vector<16x16xf32> -> vector<16x16xf32>
    %25 = arith.addf %20, %24 : vector<16x16xf32>
    %26 = vector.extract_strided_slice %14 {offsets = [0, 16], sizes = [16, 48], strides = [1, 1]} : vector<16x64xf32> to vector<16x48xf32>
    %27 = vector.extract_strided_slice %14 {offsets = [0, 0], sizes = [16, 16], strides = [1, 1]} : vector<16x64xf32> to vector<16x16xf32>
    %28 = tpu.concatenate %26, %27 in 1 : vector<16x48xf32>, vector<16x16xf32> -> vector<16x64xf32>
    %29 = arith.mulf %8, %28 : vector<16x64xf32>
    %30 = arith.truncf %29 : vector<16x64xf32> to vector<16x64xbf16>
    %31 = vector.extract_strided_slice %18 {offsets = [0, 16], sizes = [64, 16], strides = [1, 1]} : vector<64x64xbf16> to vector<64x16xbf16>
    %cst_19 = arith.constant dense<0.000000e+00> : vector<16x16xf32>
    %32 = tpu.matmul %30, %31, %cst_19 {dimension_numbers = #tpu.dot_dimension_numbers<[1], [0], [0], [1], [0, 0, 1, 1], [], []>} : vector<16x64xbf16>, vector<64x16xbf16>, vector<16x16xf32> -> vector<16x16xf32>
    %33 = arith.addf %25, %32 : vector<16x16xf32>
    %34 = vector.extract_strided_slice %14 {offsets = [0, 32], sizes = [16, 32], strides = [1, 1]} : vector<16x64xf32> to vector<16x32xf32>
    %35 = vector.extract_strided_slice %14 {offsets = [0, 0], sizes = [16, 32], strides = [1, 1]} : vector<16x64xf32> to vector<16x32xf32>
    %36 = tpu.concatenate %34, %35 in 1 : vector<16x32xf32>, vector<16x32xf32> -> vector<16x64xf32>
    %37 = arith.mulf %8, %36 : vector<16x64xf32>
    %38 = arith.truncf %37 : vector<16x64xf32> to vector<16x64xbf16>
    %39 = vector.extract_strided_slice %18 {offsets = [0, 32], sizes = [64, 16], strides = [1, 1]} : vector<64x64xbf16> to vector<64x16xbf16>
    %cst_20 = arith.constant dense<0.000000e+00> : vector<16x16xf32>
    %40 = tpu.matmul %38, %39, %cst_20 {dimension_numbers = #tpu.dot_dimension_numbers<[1], [0], [0], [1], [0, 0, 1, 1], [], []>} : vector<16x64xbf16>, vector<64x16xbf16>, vector<16x16xf32> -> vector<16x16xf32>
    %41 = arith.addf %33, %40 : vector<16x16xf32>
    %42 = vector.extract_strided_slice %14 {offsets = [0, 48], sizes = [16, 16], strides = [1, 1]} : vector<16x64xf32> to vector<16x16xf32>
    %43 = vector.extract_strided_slice %14 {offsets = [0, 0], sizes = [16, 48], strides = [1, 1]} : vector<16x64xf32> to vector<16x48xf32>
    %44 = tpu.concatenate %42, %43 in 1 : vector<16x16xf32>, vector<16x48xf32> -> vector<16x64xf32>
    %45 = arith.mulf %8, %44 : vector<16x64xf32>
    %46 = arith.truncf %45 : vector<16x64xf32> to vector<16x64xbf16>
    %47 = vector.extract_strided_slice %18 {offsets = [0, 48], sizes = [64, 16], strides = [1, 1]} : vector<64x64xbf16> to vector<64x16xbf16>
    %cst_21 = arith.constant dense<0.000000e+00> : vector<16x16xf32>
    %48 = tpu.matmul %46, %47, %cst_21 {dimension_numbers = #tpu.dot_dimension_numbers<[1], [0], [0], [1], [0, 0, 1, 1], [], []>} : vector<16x64xbf16>, vector<64x16xbf16>, vector<16x16xf32> -> vector<16x16xf32>
    %49 = arith.addf %41, %48 : vector<16x16xf32>
    %cst_22 = arith.constant dense<0xFF800000> : vector<16xf32>
    %50 = vector.multi_reduction <maximumf>, %49, %cst_22 [1] : vector<16x16xf32> to vector<16xf32>
    %51 = vector.shape_cast %50 : vector<16xf32> to vector<16x1xf32>
    %52 = vector.broadcast %51 : vector<16x1xf32> to vector<16x16xf32>
    %53 = arith.subf %49, %52 : vector<16x16xf32>
    %54 = math.exp %53 : vector<16x16xf32>
    %55 = arith.truncf %54 : vector<16x16xf32> to vector<16x16xbf16>
    %cst_23 = arith.constant 0.000000e+00 : f32
    %56 = vector.broadcast %cst_23 : f32 to vector<16x64xf32>
    %cst_24 = arith.constant 0.000000e+00 : f32
    %57 = vector.broadcast %cst_24 : f32 to vector<16x64xf32>
    %58 = vector.extract_strided_slice %19 {offsets = [0, 0], sizes = [16, 64], strides = [1, 1]} : vector<16x256xbf16> to vector<16x64xbf16>
    %cst_25 = arith.constant dense<0.000000e+00> : vector<16x64xf32>
    %59 = tpu.matmul %55, %58, %cst_25 {dimension_numbers = #tpu.dot_dimension_numbers<[1], [0], [0], [1], [0, 0, 1, 1], [], []>} : vector<16x16xbf16>, vector<16x64xbf16>, vector<16x64xf32> -> vector<16x64xf32>
    %60 = arith.mulf %59, %17 : vector<16x64xf32>
    %61 = arith.addf %56, %60 : vector<16x64xf32>
    %62 = arith.addf %57, %59 : vector<16x64xf32>
    %63 = vector.extract_strided_slice %19 {offsets = [0, 64], sizes = [16, 64], strides = [1, 1]} : vector<16x256xbf16> to vector<16x64xbf16>
    %cst_26 = arith.constant dense<0.000000e+00> : vector<16x64xf32>
    %64 = tpu.matmul %55, %63, %cst_26 {dimension_numbers = #tpu.dot_dimension_numbers<[1], [0], [0], [1], [0, 0, 1, 1], [], []>} : vector<16x16xbf16>, vector<16x64xbf16>, vector<16x64xf32> -> vector<16x64xf32>
    %65 = vector.extract_strided_slice %17 {offsets = [0, 16], sizes = [16, 48], strides = [1, 1]} : vector<16x64xf32> to vector<16x48xf32>
    %66 = vector.extract_strided_slice %17 {offsets = [0, 0], sizes = [16, 16], strides = [1, 1]} : vector<16x64xf32> to vector<16x16xf32>
    %67 = tpu.concatenate %65, %66 in 1 : vector<16x48xf32>, vector<16x16xf32> -> vector<16x64xf32>
    %68 = arith.mulf %64, %67 : vector<16x64xf32>
    %69 = arith.addf %61, %68 : vector<16x64xf32>
    %70 = arith.addf %62, %64 : vector<16x64xf32>
    %71 = vector.extract_strided_slice %19 {offsets = [0, 128], sizes = [16, 64], strides = [1, 1]} : vector<16x256xbf16> to vector<16x64xbf16>
    %cst_27 = arith.constant dense<0.000000e+00> : vector<16x64xf32>
    %72 = tpu.matmul %55, %71, %cst_27 {dimension_numbers = #tpu.dot_dimension_numbers<[1], [0], [0], [1], [0, 0, 1, 1], [], []>} : vector<16x16xbf16>, vector<16x64xbf16>, vector<16x64xf32> -> vector<16x64xf32>
    %73 = vector.extract_strided_slice %17 {offsets = [0, 32], sizes = [16, 32], strides = [1, 1]} : vector<16x64xf32> to vector<16x32xf32>
    %74 = vector.extract_strided_slice %17 {offsets = [0, 0], sizes = [16, 32], strides = [1, 1]} : vector<16x64xf32> to vector<16x32xf32>
    %75 = tpu.concatenate %73, %74 in 1 : vector<16x32xf32>, vector<16x32xf32> -> vector<16x64xf32>
    %76 = arith.mulf %72, %75 : vector<16x64xf32>
    %77 = arith.addf %69, %76 : vector<16x64xf32>
    %78 = arith.addf %70, %72 : vector<16x64xf32>
    %79 = vector.extract_strided_slice %19 {offsets = [0, 192], sizes = [16, 64], strides = [1, 1]} : vector<16x256xbf16> to vector<16x64xbf16>
    %cst_28 = arith.constant dense<0.000000e+00> : vector<16x64xf32>
    %80 = tpu.matmul %55, %79, %cst_28 {dimension_numbers = #tpu.dot_dimension_numbers<[1], [0], [0], [1], [0, 0, 1, 1], [], []>} : vector<16x16xbf16>, vector<16x64xbf16>, vector<16x64xf32> -> vector<16x64xf32>
    %81 = vector.extract_strided_slice %17 {offsets = [0, 48], sizes = [16, 16], strides = [1, 1]} : vector<16x64xf32> to vector<16x16xf32>
    %82 = vector.extract_strided_slice %17 {offsets = [0, 0], sizes = [16, 48], strides = [1, 1]} : vector<16x64xf32> to vector<16x48xf32>
    %83 = tpu.concatenate %81, %82 in 1 : vector<16x16xf32>, vector<16x48xf32> -> vector<16x64xf32>
    %84 = arith.mulf %80, %83 : vector<16x64xf32>
    %85 = arith.addf %77, %84 : vector<16x64xf32>
    %86 = arith.addf %78, %80 : vector<16x64xf32>
    %87 = tpu.reciprocal %86 {approx = true} : vector<16x64xf32> -> vector<16x64xf32>
    %88 = arith.mulf %85, %87 : vector<16x64xf32>
    %cst_29 = arith.constant 0.000000e+00 : f32
    %89 = vector.broadcast %cst_29 : f32 to vector<16x64xf32>
    %90 = arith.maximumf %88, %89 : vector<16x64xf32>
    %c0_30 = arith.constant 0 : index
    %c0_31 = arith.constant 0 : index
    %91 = vector.load %arg9[%c0_30, %c0_31] : memref<16x64xf32, #tpu.memory_space<vmem>>, vector<16x64xf32>
    tpu.vector_store %arg9[%c0_30, %c0_31], %90 {strides = array<i32>} : memref<16x64xf32, #tpu.memory_space<vmem>>, vector<16x64xf32>,
    return
  }
  func.func @transform_0(%arg0: i32) -> (i32, i32) {
    %c0_i32 = arith.constant 0 : i32
    %c0_i32_0 = arith.constant 0 : i32
    return %arg0, %c0_i32 : i32, i32
  }
  func.func @transform_1(%arg0: i32) -> (i32, i32) {
    %c0_i32 = arith.constant 0 : i32
    %c0_i32_0 = arith.constant 0 : i32
    return %arg0, %c0_i32 : i32, i32
  }
  func.func @transform_2(%arg0: i32) -> (i32, i32) {
    %c0_i32 = arith.constant 0 : i32
    %c0_i32_0 = arith.constant 0 : i32
    %c0_i32_1 = arith.constant 0 : i32
    return %c0_i32, %c0_i32_0 : i32, i32
  }
  func.func @transform_3(%arg0: i32) -> (i32, i32) {
    %c0_i32 = arith.constant 0 : i32
    %c0_i32_0 = arith.constant 0 : i32
    %c0_i32_1 = arith.constant 0 : i32
    return %c0_i32, %c0_i32_0 : i32, i32
  }
  func.func @transform_4(%arg0: i32) -> (i32, i32) {
    %c0_i32 = arith.constant 0 : i32
    %c0_i32_0 = arith.constant 0 : i32
    %c0_i32_1 = arith.constant 0 : i32
    return %c0_i32, %c0_i32_0 : i32, i32
  }
  func.func @transform_5(%arg0: i32) -> (i32, i32) {
    %c0_i32 = arith.constant 0 : i32
    %c0_i32_0 = arith.constant 0 : i32
    %c0_i32_1 = arith.constant 0 : i32
    return %c0_i32, %c0_i32_0 : i32, i32
  }
  func.func @transform_6(%arg0: i32) -> (i32, i32) {
    %c0_i32 = arith.constant 0 : i32
    %c0_i32_0 = arith.constant 0 : i32
    %c0_i32_1 = arith.constant 0 : i32
    return %c0_i32, %c0_i32_0 : i32, i32
  }
  func.func @transform_7(%arg0: i32) -> (i32, i32) {
    %c0_i32 = arith.constant 0 : i32
    %c0_i32_0 = arith.constant 0 : i32
    %c0_i32_1 = arith.constant 0 : i32
    return %c0_i32, %c0_i32_0 : i32, i32
  }
  func.func @transform_8(%arg0: i32) -> (i32, i32) {
    %c0_i32 = arith.constant 0 : i32
    %c0_i32_0 = arith.constant 0 : i32
    return %arg0, %c0_i32 : i32, i32
  }
}

</mosaic_0001>

<llo_original>
// kernel: crosa_encoder.1
$region0: #{crosa_encoder.1}
  #allocation0 [shape = 'u32[]', space=smem, size = 0x4, offset = 0x4, fixed_abs, tag = 'smem constant byte address 0x4 - core index']
  #allocation1 [shape = 'u32[144,128]{1,0:T(1,128)}', space=vmem, size = 0x12000, scoped, tag = 'internal scratch']
  %s0 = inlined_call_operand.hbm [shape: f32[16,32], index: 0, kind: input, shape index: {}]
  %s1 = inlined_call_operand.hbm [shape: f32[16,24], index: 1, kind: input, shape index: {}]
  %s2 = inlined_call_operand.hbm [shape: bf16[32,64], index: 2, kind: input, shape index: {}]
  %s3 = inlined_call_operand.hbm [shape: bf16[24,128], index: 3, kind: input, shape index: {}]
  %s4 = inlined_call_operand.vmem [shape: f32[1,64], index: 4, kind: input, shape index: {}]
  %s5 = inlined_call_operand.vmem [shape: f32[1,128], index: 5, kind: input, shape index: {}]
  %s6 = inlined_call_operand.hbm [shape: bf16[64,64], index: 6, kind: input, shape index: {}]
  %s7 = inlined_call_operand.hbm [shape: bf16[16,256], index: 7, kind: input, shape index: {}]
  %s8 = inlined_call_operand.hbm [shape: f32[16,64], index: 8, kind: output, shape index: {}]
  %s9 = sld [smem:[#allocation0]]
  $region66: #{crosa_encoder.1} parent=0
    _
  %s11 = ssub.s32 1, %s9
  %s12 = scalar_select 0, %s11, %s9
  $region1: #{crosa_encoder.1} parent=0
    #allocation2 [shape = 'u8[8192]{0}', space=vmem, size = 0x2000, scoped, tag = 'input window, operand 0, single buffered']
    #allocation3 [shape = 's32[1]{0}', space=sflag, size = 0x4, scoped, tag = 'scoped memory for crosa_encoder.1']
    #allocation4 [shape = 's32[1]{0}', space=sflag, size = 0x4, scoped, tag = 'scoped memory for crosa_encoder.1']
    #allocation5 [shape = 'u8[8192]{0}', space=vmem, size = 0x2000, scoped, tag = 'input window, operand 1, single buffered']
    #allocation6 [shape = 's32[1]{0}', space=sflag, size = 0x4, scoped, tag = 'scoped memory for crosa_encoder.1']
    #allocation7 [shape = 'u8[8192]{0}', space=vmem, size = 0x2000, scoped, tag = 'input window, operand 2, single buffered']
    #allocation8 [shape = 'u8[6144]{0}', space=vmem, size = 0x1800, scoped, tag = 'input window, operand 3, single buffered']
    #allocation9 [shape = 's32[1]{0}', space=sflag, size = 0x4, scoped, tag = 'scoped memory for crosa_encoder.1']
    #allocation10 [shape = 'u8[16384]{0}', space=vmem, size = 0x4000, scoped, tag = 'input window, operand 6, single buffered']
    #allocation11 [shape = 'u8[8192]{0}', space=vmem, size = 0x2000, scoped, tag = 'input window, operand 7, single buffered']
    #allocation12 [shape = 's32[1]{0}', space=sflag, size = 0x4, scoped, tag = 'scoped memory for crosa_encoder.1']
    #allocation13 [shape = 'u8[8192]{0}', space=vmem, size = 0x2000, scoped, tag = 'output window, operand 0, single buffered']
    %13 = vsyncpa [#allocation3], 0
    %14 = vsyncpa [#allocation6], 0
    %15 = vsyncpa [#allocation9], 0
    %16 = vsyncpa [#allocation12], 0
    %17 = vsyncpa [#allocation4], 0
    // Predicated region
    $region2: #{crosa_encoder.1} parent=1 // pred_check
      _
    $region3: #{crosa_encoder.1} parent=1 // pred_check_branch
      %19 = sbr.rel (0) target = $region5
    $region4: #{crosa_encoder.1} parent=1 // pred_region
      %s21 = ssub.s32 256, 256
      %22 = vsyncadd [#allocation3], %s21
      %s23 = sshll.u32 [#allocation2], 4
      %s24 = int_to_ptr.vmem [resolvable:$true] %s23
      %29 = dma.hbm_to_vmem [thread:$0]  %s0, 256, %s24, [#allocation3], 128, 128, 8
    $region5: #{crosa_encoder.1} parent=1 // pred_fallthru
      _
    // Predicated region
    $region6: #{crosa_encoder.1} parent=1 // pred_check
      _
    $region7: #{crosa_encoder.1} parent=1 // pred_check_branch
      %31 = sbr.rel (0) target = $region9
    $region8: #{crosa_encoder.1} parent=1 // pred_region
      %s33 = ssub.s32 256, 256
      %34 = vsyncadd [#allocation6], %s33
      %s35 = sshll.u32 [#allocation5], 4
      %s36 = int_to_ptr.vmem [resolvable:$true] %s35
      %41 = dma.hbm_to_vmem [thread:$0]  %s1, 256, %s36, [#allocation6], 128, 128, 8
    $region9: #{crosa_encoder.1} parent=1 // pred_fallthru
      _
    // Predicated region
    $region10: #{crosa_encoder.1} parent=1 // pred_check
      _
    $region11: #{crosa_encoder.1} parent=1 // pred_check_branch
      %43 = sbr.rel (0) target = $region13
    $region12: #{crosa_encoder.1} parent=1 // pred_region
      %s45 = ssub.s32 256, 256
      %46 = vsyncadd [#allocation6], %s45
      %s47 = sshll.u32 [#allocation7], 4
      %s48 = int_to_ptr.vmem [resolvable:$true] %s47
      %53 = dma.hbm_to_vmem [thread:$0]  %s2, 256, %s48, [#allocation6], 64, 64, 4
    $region13: #{crosa_encoder.1} parent=1 // pred_fallthru
      _
    // Predicated region
    $region14: #{crosa_encoder.1} parent=1 // pred_check
      _
    $region15: #{crosa_encoder.1} parent=1 // pred_check_branch
      %55 = sbr.rel (0) target = $region17
    $region16: #{crosa_encoder.1} parent=1 // pred_region
      %s57 = ssub.s32 192, 192
      %58 = vsyncadd [#allocation9], %s57
      %s59 = sshll.u32 [#allocation8], 4
      %s60 = int_to_ptr.vmem [resolvable:$true] %s59
      %65 = dma.hbm_to_vmem [thread:$0]  %s3, 192, %s60, [#allocation9], 64, 64, 4
    $region17: #{crosa_encoder.1} parent=1 // pred_fallthru
      _
    // Predicated region
    $region18: #{crosa_encoder.1} parent=1 // pred_check
      _
    $region19: #{crosa_encoder.1} parent=1 // pred_check_branch
      %67 = sbr.rel (0) target = $region21
    $region20: #{crosa_encoder.1} parent=1 // pred_region
      _
    $region21: #{crosa_encoder.1} parent=1 // pred_fallthru
      _
    // Predicated region
    $region22: #{crosa_encoder.1} parent=1 // pred_check
      _
    $region23: #{crosa_encoder.1} parent=1 // pred_check_branch
      %69 = sbr.rel (0) target = $region25
    $region24: #{crosa_encoder.1} parent=1 // pred_region
      _
    $region25: #{crosa_encoder.1} parent=1 // pred_fallthru
      _
    // Predicated region
    $region26: #{crosa_encoder.1} parent=1 // pred_check
      _
    $region27: #{crosa_encoder.1} parent=1 // pred_check_branch
      %71 = sbr.rel (0) target = $region29
    $region28: #{crosa_encoder.1} parent=1 // pred_region
      %s73 = ssub.s32 512, 512
      %74 = vsyncadd [#allocation9], %s73
      %s75 = sshll.u32 [#allocation10], 4
      %s76 = int_to_ptr.vmem [resolvable:$true] %s75
      %81 = dma.hbm_to_vmem [thread:$0]  %s6, 512, %s76, [#allocation9], 64, 64, 4
    $region29: #{crosa_encoder.1} parent=1 // pred_fallthru
      _
    // Predicated region
    $region30: #{crosa_encoder.1} parent=1 // pred_check
      _
    $region31: #{crosa_encoder.1} parent=1 // pred_check_branch
      %83 = sbr.rel (0) target = $region33
    $region32: #{crosa_encoder.1} parent=1 // pred_region
      %s85 = ssub.s32 256, 256
      %86 = vsyncadd [#allocation12], %s85
      %s87 = sshll.u32 [#allocation11], 4
      %s88 = int_to_ptr.vmem [resolvable:$true] %s87
      %93 = dma.hbm_to_vmem [thread:$0]  %s7, 256, %s88, [#allocation12], 128, 128, 8
    $region33: #{crosa_encoder.1} parent=1 // pred_fallthru
      _
    // Predicated region
    $region34: #{crosa_encoder.1} parent=1 // pred_check
      _
    $region35: #{crosa_encoder.1} parent=1 // pred_check_branch
      %95 = sbr.rel (0) target = $region37
    $region36: #{crosa_encoder.1} parent=1 // pred_region
      %96 = dma.done [#allocation3], 256
    $region37: #{crosa_encoder.1} parent=1 // pred_fallthru
      _
    // Predicated region
    $region38: #{crosa_encoder.1} parent=1 // pred_check
      _
    $region39: #{crosa_encoder.1} parent=1 // pred_check_branch
      %98 = sbr.rel (0) target = $region41
    $region40: #{crosa_encoder.1} parent=1 // pred_region
      %99 = dma.done [#allocation6], 256
    $region41: #{crosa_encoder.1} parent=1 // pred_fallthru
      _
    // Predicated region
    $region42: #{crosa_encoder.1} parent=1 // pred_check
      _
    $region43: #{crosa_encoder.1} parent=1 // pred_check_branch
      %101 = sbr.rel (0) target = $region45
    $region44: #{crosa_encoder.1} parent=1 // pred_region
      %102 = dma.done [#allocation6], 256
    $region45: #{crosa_encoder.1} parent=1 // pred_fallthru
      _
    // Predicated region
    $region46: #{crosa_encoder.1} parent=1 // pred_check
      _
    $region47: #{crosa_encoder.1} parent=1 // pred_check_branch
      %104 = sbr.rel (0) target = $region49
    $region48: #{crosa_encoder.1} parent=1 // pred_region
      %105 = dma.done [#allocation9], 192
    $region49: #{crosa_encoder.1} parent=1 // pred_fallthru
      _
    // Predicated region
    $region50: #{crosa_encoder.1} parent=1 // pred_check
      _
    $region51: #{crosa_encoder.1} parent=1 // pred_check_branch
      %107 = sbr.rel (0) target = $region53
    $region52: #{crosa_encoder.1} parent=1 // pred_region
      %108 = dma.done [#allocation9], 512
    $region53: #{crosa_encoder.1} parent=1 // pred_fallthru
      _
    // Predicated region
    $region54: #{crosa_encoder.1} parent=1 // pred_check
      _
    $region55: #{crosa_encoder.1} parent=1 // pred_check_branch
      %110 = sbr.rel (0) target = $region57
    $region56: #{crosa_encoder.1} parent=1 // pred_region
      %111 = dma.done [#allocation12], 256
    $region57: #{crosa_encoder.1} parent=1 // pred_fallthru
      _
    %v113 = vld [vmem:[#allocation2] sm:$0xff]
    %v114 = vld [vmem:[#allocation2 + $0x8] sm:$0xff]
    %v115 = vpack.c.bf16 %v114, %v113
    %v116 = vld [vmem:[#allocation5] sm:$0xff]
    %v117 = vld [vmem:[#allocation5 + $0x8] sm:$0xff]
    %v118 = vpack.c.bf16 %v117, %v116
    %v119 = vld [vmem:[#allocation7] sm:$0xf]
    %v120 = vld [vmem:[#allocation7 + $0x4] sm:$0xf]
    %v121 = vld [vmem:[#allocation7 + $0x8] sm:$0xf]
    %v122 = vld [vmem:[#allocation7 + $0xc] sm:$0xf]
    %v123 = vld [vmem:[%s4] sm:$0x1]
    %v125 = vlaneseq
    %v126 = vshrl.u32 %v125, 7
    %v127 = vsub.s32 0, %v126
    %v128 = vrot.slane %v123, %v127
    %v134 = vunpack.c.l.b16 %v119
    %v135 = vunpack.c.l.b16 %v120
    %v136 = vunpack.c.l.b16 %v121
    %v137 = vunpack.c.l.b16 %v122
    %v138 = vpack.c.b16 %v135, %v134
    %v139 = vpack.c.b16 %v137, %v136
    %vm142 = vcmask 261120
    %v144 = vsel %vm142, %v115, 0
    %146 = vmatprep.subr.bf16.mxu0 0
    %147 = vmatpush1.bf16.msra.mxu0 0
    %148 = vmatprep.subr.bf16.mxu0 0
    %149 = vmatpush1.bf16.msra.mxu0 0
    %150 = vmatprep.subr.bf16.mxu0 0
    %151 = vmatpush1.bf16.msra.mxu0 0
    %152 = vmatprep.subr.bf16.mxu0 0
    %153 = vmatpush1.bf16.msra.mxu0 0
    %154 = vmatprep.subr.bf16.mxu0 0
    %155 = vmatpush1.bf16.msra.mxu0 0
    %156 = vmatprep.subr.bf16.mxu0 0
    %157 = vmatpush1.bf16.msra.mxu0 0
    %158 = vmatprep.subr.bf16.mxu0 0
    %159 = vmatpush1.bf16.msra.mxu0 %v139
    %160 = vmatprep.subr.bf16.mxu0 0
    %161 = vmatpush1.bf16.msra.mxu0 %v138
    %162 = vmatprep.subr.bf16.mxu0 0
    %163 = vmatpush2.bf16.msra.mxu0 0
    %164 = vmatprep.subr.bf16.mxu0 0
    %165 = vmatpush2.bf16.msra.mxu0 0
    %166 = vmatprep.subr.bf16.mxu0 0
    %167 = vmatpush2.bf16.msra.mxu0 0
    %168 = vmatprep.subr.bf16.mxu0 0
    %169 = vmatpush2.bf16.msra.mxu0 0
    %170 = vmatprep.subr.bf16.mxu0 0
    %171 = vmatpush2.bf16.msra.mxu0 0
    %172 = vmatprep.subr.bf16.mxu0 0
    %173 = vmatpush2.bf16.msra.mxu0 0
    %174 = vmatprep.subr.bf16.mxu0 0
    %175 = vmatpush2.bf16.msra.mxu0 0
    %176 = vmatprep.subr.bf16.mxu0 0
    %177 = vmatpush2.bf16.msra.mxu0 0
    %178 = vmatprep.mubr.bf16.mxu0 0
    %179 = vmatmul.mubr.bf16.gmra.mxu0 %v144
    %v180 = vpop.f32.mrf.mxu0
    %v181 = vadd.f32 %v128, %v180
    %v182 = vpop.f32.mrf.mxu0
    %v183 = vpop.f32.mrf.mxu0
    %v184 = vadd.f32 %v128, %v183
    %v185 = vpop.f32.mrf.mxu0
    %186 = vdwg.mxu0
    %v187 = vld [vmem:[#allocation8] sm:$0xf]
    %v188 = vld [vmem:[#allocation8 + $0x4] sm:$0xf]
    %v189 = vld [vmem:[#allocation8 + $0x8] sm:$0xf]
    %v190 = vld [vmem:[%s5] sm:$0x1]
    %v192 = vlaneseq
    %v193 = vshrl.u32 %v192, 7
    %v194 = vsub.s32 0, %v193
    %v195 = vrot.slane %v190, %v194
    %v200 = vunpack.c.l.b16 %v187
    %v201 = vunpack.c.l.b16 %v188
    %v202 = vunpack.c.l.b16 %v189
    %v203 = vpack.c.b16 %v201, %v200
    %v204 = vpack.c.b16 %v202, %v202
    %vm206 = vcmask 195584
    %v208 = vsel %vm206, %v118, 0
    %vm210 = vcmask 1043456
    %v212 = vsel %vm210, %v204, 0
    %214 = vmatprep.subr.bf16.mxu0 0
    %215 = vmatpush1.bf16.msra.mxu0 0
    %216 = vmatprep.subr.bf16.mxu0 0
    %217 = vmatpush1.bf16.msra.mxu0 0
    %218 = vmatprep.subr.bf16.mxu0 0
    %219 = vmatpush1.bf16.msra.mxu0 0
    %220 = vmatprep.subr.bf16.mxu0 0
    %221 = vmatpush1.bf16.msra.mxu0 0
    %222 = vmatprep.subr.bf16.mxu0 0
    %223 = vmatpush1.bf16.msra.mxu0 0
    %224 = vmatprep.subr.bf16.mxu0 0
    %225 = vmatpush1.bf16.msra.mxu0 0
    %226 = vmatprep.subr.bf16.mxu0 0
    %227 = vmatpush1.bf16.msra.mxu0 %v212
    %228 = vmatprep.subr.bf16.mxu0 0
    %229 = vmatpush1.bf16.msra.mxu0 %v203
    %230 = vmatprep.subr.bf16.mxu0 0
    %231 = vmatpush2.bf16.msra.mxu0 0
    %232 = vmatprep.subr.bf16.mxu0 0
    %233 = vmatpush2.bf16.msra.mxu0 0
    %234 = vmatprep.subr.bf16.mxu0 0
    %235 = vmatpush2.bf16.msra.mxu0 0
    %236 = vmatprep.subr.bf16.mxu0 0
    %237 = vmatpush2.bf16.msra.mxu0 0
    %238 = vmatprep.subr.bf16.mxu0 0
    %239 = vmatpush2.bf16.msra.mxu0 0
    %240 = vmatprep.subr.bf16.mxu0 0
    %241 = vmatpush2.bf16.msra.mxu0 0
    %242 = vmatprep.subr.bf16.mxu0 0
    %243 = vmatpush2.bf16.msra.mxu0 0
    %244 = vmatprep.subr.bf16.mxu0 0
    %245 = vmatpush2.bf16.msra.mxu0 0
    %246 = vmatprep.mubr.bf16.mxu0 0
    %247 = vmatmul.mubr.bf16.gmra.mxu0 %v208
    %v248 = vpop.f32.mrf.mxu0
    %v249 = vadd.f32 %v195, %v248
    %v250 = vpop.f32.mrf.mxu0
    %v251 = vpop.f32.mrf.mxu0
    %v252 = vadd.f32 %v195, %v251
    %v253 = vpop.f32.mrf.mxu0
    %254 = vdwg.mxu0
    %v255 = vmax.f32 %v249, 0.0
    %v256 = vmax.f32 %v252, 0.0
    %v257 = vld [vmem:[#allocation10] sm:$0xf]
    %v258 = vld [vmem:[#allocation10 + $0x4] sm:$0xf]
    %v259 = vld [vmem:[#allocation10 + $0x8] sm:$0xf]
    %v260 = vld [vmem:[#allocation10 + $0xc] sm:$0xf]
    %v261 = vld [vmem:[#allocation10 + $0x10] sm:$0xf]
    %v262 = vld [vmem:[#allocation10 + $0x14] sm:$0xf]
    %v263 = vld [vmem:[#allocation10 + $0x18] sm:$0xf]
    %v264 = vld [vmem:[#allocation10 + $0x1c] sm:$0xf]
    %v265 = vld [vmem:[#allocation11] sm:$0xff]
    %v266 = vld [vmem:[#allocation11 + $0x8] sm:$0xff]
    %v267 = vmul.f32 %v181, %v249
    %v268 = vmul.f32 %v184, %v252
    %v269 = vpack.c.bf16 %v268, %v267
    %272 = vrot.lane.b32.xlu0 %v249, 112
    %v273 = vpop.permute.xlu0 %272
    %274 = vrot.lane.b32.xlu0 %v252, 112
    %v275 = vpop.permute.xlu0 %274
    %278 = vrot.lane.b32.xlu0 %v249, 48
    %v279 = vpop.permute.xlu0 %278
    %280 = vrot.lane.b32.xlu0 %v252, 48
    %v281 = vpop.permute.xlu0 %280
    %vm284 = vcmask 392192
    %v285 = vsel %vm284, %v273, %v279
    %v286 = vsel %vm284, %v275, %v281
    %v287 = vmul.f32 %v181, %v285
    %v288 = vmul.f32 %v184, %v286
    %v289 = vpack.c.bf16 %v288, %v287
    %v298 = vunpack.c.l.b16 %v257
    %v299 = vunpack.c.l.b16 %v258
    %v300 = vunpack.c.l.b16 %v259
    %v301 = vunpack.c.l.b16 %v260
    %v302 = vunpack.c.l.b16 %v261
    %v303 = vunpack.c.l.b16 %v262
    %v304 = vunpack.c.l.b16 %v263
    %v305 = vunpack.c.l.b16 %v264
    %v306 = vpack.c.b16 %v299, %v298
    %v307 = vpack.c.b16 %v301, %v300
    %v308 = vpack.c.b16 %v303, %v302
    %v309 = vpack.c.b16 %v305, %v304
    %310 = vrot.lane.b32.xlu0 %v306, 112
    %v311 = vpop.permute.xlu0 %310
    %312 = vrot.lane.b32.xlu0 %v307, 112
    %v313 = vpop.permute.xlu0 %312
    %314 = vrot.lane.b32.xlu0 %v308, 112
    %v315 = vpop.permute.xlu0 %314
    %316 = vrot.lane.b32.xlu0 %v309, 112
    %v317 = vpop.permute.xlu0 %316
    %vm322 = vcmask 523264
    %v324 = vsel %vm322, %v289, 0
    %326 = vmatprep.subr.bf16.mxu0 0
    %327 = vmatpush1.bf16.msra.mxu0 0
    %328 = vmatprep.subr.bf16.mxu0 0
    %329 = vmatpush1.bf16.msra.mxu0 0
    %330 = vmatprep.subr.bf16.mxu0 0
    %331 = vmatpush1.bf16.msra.mxu0 0
    %332 = vmatprep.subr.bf16.mxu0 0
    %333 = vmatpush1.bf16.msra.mxu0 0
    %334 = vmatprep.subr.bf16.mxu0 0
    %335 = vmatpush1.bf16.msra.mxu0 %v317
    %336 = vmatprep.subr.bf16.mxu0 0
    %337 = vmatpush1.bf16.msra.mxu0 %v315
    %338 = vmatprep.subr.bf16.mxu0 0
    %339 = vmatpush1.bf16.msra.mxu0 %v313
    %340 = vmatprep.subr.bf16.mxu0 0
    %341 = vmatpush1.bf16.msra.mxu0 %v311
    %342 = vmatprep.subr.bf16.mxu0 0
    %343 = vmatpush2.bf16.msra.mxu0 0
    %344 = vmatprep.subr.bf16.mxu0 0
    %345 = vmatpush2.bf16.msra.mxu0 0
    %346 = vmatprep.subr.bf16.mxu0 0
    %347 = vmatpush2.bf16.msra.mxu0 0
    %348 = vmatprep.subr.bf16.mxu0 0
    %349 = vmatpush2.bf16.msra.mxu0 0
    %350 = vmatprep.subr.bf16.mxu0 0
    %351 = vmatpush2.bf16.msra.mxu0 0
    %352 = vmatprep.subr.bf16.mxu0 0
    %353 = vmatpush2.bf16.msra.mxu0 0
    %354 = vmatprep.subr.bf16.mxu0 0
    %355 = vmatpush2.bf16.msra.mxu0 0
    %356 = vmatprep.subr.bf16.mxu0 0
    %357 = vmatpush2.bf16.msra.mxu0 0
    %358 = vmatprep.mubr.bf16.mxu0 0
    %359 = vmatmul.mubr.bf16.gmra.mxu0 %v324
    %v360 = vpop.f32.mrf.mxu0
    %v361 = vadd.f32 0.0, %v360
    %v362 = vpop.f32.mrf.mxu0
    %v363 = vpop.f32.mrf.mxu0
    %v364 = vadd.f32 0.0, %v363
    %v365 = vpop.f32.mrf.mxu0
    %366 = vdwg.mxu0
    %v372 = vsel %vm322, %v269, 0
    %374 = vmatprep.subr.bf16.mxu0 0
    %375 = vmatpush1.bf16.msra.mxu0 0
    %376 = vmatprep.subr.bf16.mxu0 0
    %377 = vmatpush1.bf16.msra.mxu0 0
    %378 = vmatprep.subr.bf16.mxu0 0
    %379 = vmatpush1.bf16.msra.mxu0 0
    %380 = vmatprep.subr.bf16.mxu0 0
    %381 = vmatpush1.bf16.msra.mxu0 0
    %382 = vmatprep.subr.bf16.mxu0 0
    %383 = vmatpush1.bf16.msra.mxu0 %v309
    %384 = vmatprep.subr.bf16.mxu0 0
    %385 = vmatpush1.bf16.msra.mxu0 %v308
    %386 = vmatprep.subr.bf16.mxu0 0
    %387 = vmatpush1.bf16.msra.mxu0 %v307
    %388 = vmatprep.subr.bf16.mxu0 0
    %389 = vmatpush1.bf16.msra.mxu0 %v306
    %390 = vmatprep.subr.bf16.mxu0 0
    %391 = vmatpush2.bf16.msra.mxu0 0
    %392 = vmatprep.subr.bf16.mxu0 0
    %393 = vmatpush2.bf16.msra.mxu0 0
    %394 = vmatprep.subr.bf16.mxu0 0
    %395 = vmatpush2.bf16.msra.mxu0 0
    %396 = vmatprep.subr.bf16.mxu0 0
    %397 = vmatpush2.bf16.msra.mxu0 0
    %398 = vmatprep.subr.bf16.mxu0 0
    %399 = vmatpush2.bf16.msra.mxu0 0
    %400 = vmatprep.subr.bf16.mxu0 0
    %401 = vmatpush2.bf16.msra.mxu0 0
    %402 = vmatprep.subr.bf16.mxu0 0
    %403 = vmatpush2.bf16.msra.mxu0 0
    %404 = vmatprep.subr.bf16.mxu0 0
    %405 = vmatpush2.bf16.msra.mxu0 0
    %406 = vmatprep.mubr.bf16.mxu0 0
    %407 = vmatmul.mubr.bf16.gmra.mxu0 %v372
    %v408 = vpop.f32.mrf.mxu0
    %v409 = vadd.f32 %v361, %v408
    %v410 = vpop.f32.mrf.mxu0
    %v411 = vpop.f32.mrf.mxu0
    %v412 = vadd.f32 %v364, %v411
    %v413 = vpop.f32.mrf.mxu0
    %414 = vdwg.mxu0
    %415 = vrot.lane.b32.xlu0 %v249, 96
    %v416 = vpop.permute.xlu0 %415
    %417 = vrot.lane.b32.xlu0 %v252, 96
    %v418 = vpop.permute.xlu0 %417
    %421 = vrot.lane.b32.xlu0 %v249, 32
    %v422 = vpop.permute.xlu0 %421
    %423 = vrot.lane.b32.xlu0 %v252, 32
    %v424 = vpop.permute.xlu0 %423
    %v427 = vsel %vm142, %v416, %v422
    %v428 = vsel %vm142, %v418, %v424
    %v429 = vmul.f32 %v181, %v427
    %v430 = vmul.f32 %v184, %v428
    %v431 = vpack.c.bf16 %v430, %v429
    %432 = vrot.lane.b32.xlu0 %v306, 96
    %v433 = vpop.permute.xlu0 %432
    %434 = vrot.lane.b32.xlu0 %v307, 96
    %v435 = vpop.permute.xlu0 %434
    %436 = vrot.lane.b32.xlu0 %v308, 96
    %v437 = vpop.permute.xlu0 %436
    %438 = vrot.lane.b32.xlu0 %v309, 96
    %v439 = vpop.permute.xlu0 %438
    %v445 = vsel %vm322, %v431, 0
    %447 = vmatprep.subr.bf16.mxu0 0
    %448 = vmatpush1.bf16.msra.mxu0 0
    %449 = vmatprep.subr.bf16.mxu0 0
    %450 = vmatpush1.bf16.msra.mxu0 0
    %451 = vmatprep.subr.bf16.mxu0 0
    %452 = vmatpush1.bf16.msra.mxu0 0
    %453 = vmatprep.subr.bf16.mxu0 0
    %454 = vmatpush1.bf16.msra.mxu0 0
    %455 = vmatprep.subr.bf16.mxu0 0
    %456 = vmatpush1.bf16.msra.mxu0 %v439
    %457 = vmatprep.subr.bf16.mxu0 0
    %458 = vmatpush1.bf16.msra.mxu0 %v437
    %459 = vmatprep.subr.bf16.mxu0 0
    %460 = vmatpush1.bf16.msra.mxu0 %v435
    %461 = vmatprep.subr.bf16.mxu0 0
    %462 = vmatpush1.bf16.msra.mxu0 %v433
    %463 = vmatprep.subr.bf16.mxu0 0
    %464 = vmatpush2.bf16.msra.mxu0 0
    %465 = vmatprep.subr.bf16.mxu0 0
    %466 = vmatpush2.bf16.msra.mxu0 0
    %467 = vmatprep.subr.bf16.mxu0 0
    %468 = vmatpush2.bf16.msra.mxu0 0
    %469 = vmatprep.subr.bf16.mxu0 0
    %470 = vmatpush2.bf16.msra.mxu0 0
    %471 = vmatprep.subr.bf16.mxu0 0
    %472 = vmatpush2.bf16.msra.mxu0 0
    %473 = vmatprep.subr.bf16.mxu0 0
    %474 = vmatpush2.bf16.msra.mxu0 0
    %475 = vmatprep.subr.bf16.mxu0 0
    %476 = vmatpush2.bf16.msra.mxu0 0
    %477 = vmatprep.subr.bf16.mxu0 0
    %478 = vmatpush2.bf16.msra.mxu0 0
    %479 = vmatprep.mubr.bf16.mxu0 0
    %480 = vmatmul.mubr.bf16.gmra.mxu0 %v445
    %v481 = vpop.f32.mrf.mxu0
    %v482 = vadd.f32 0.0, %v481
    %v483 = vpop.f32.mrf.mxu0
    %v484 = vpop.f32.mrf.mxu0
    %v485 = vadd.f32 0.0, %v484
    %v486 = vpop.f32.mrf.mxu0
    %487 = vdwg.mxu0
    %v488 = vadd.f32 %v409, %v482
    %v489 = vadd.f32 %v412, %v485
    %490 = vrot.lane.b32.xlu0 %v249, 80
    %v491 = vpop.permute.xlu0 %490
    %492 = vrot.lane.b32.xlu0 %v252, 80
    %v493 = vpop.permute.xlu0 %492
    %496 = vrot.lane.b32.xlu0 %v249, 16
    %v497 = vpop.permute.xlu0 %496
    %498 = vrot.lane.b32.xlu0 %v252, 16
    %v499 = vpop.permute.xlu0 %498
    %vm502 = vcmask 130048
    %v503 = vsel %vm502, %v491, %v497
    %v504 = vsel %vm502, %v493, %v499
    %v505 = vmul.f32 %v181, %v503
    %v506 = vmul.f32 %v184, %v504
    %v507 = vpack.c.bf16 %v506, %v505
    %508 = vrot.lane.b32.xlu0 %v306, 80
    %v509 = vpop.permute.xlu0 %508
    %510 = vrot.lane.b32.xlu0 %v307, 80
    %v511 = vpop.permute.xlu0 %510
    %512 = vrot.lane.b32.xlu0 %v308, 80
    %v513 = vpop.permute.xlu0 %512
    %514 = vrot.lane.b32.xlu0 %v309, 80
    %v515 = vpop.permute.xlu0 %514
    %v521 = vsel %vm322, %v507, 0
    %523 = vmatprep.subr.bf16.mxu0 0
    %524 = vmatpush1.bf16.msra.mxu0 0
    %525 = vmatprep.subr.bf16.mxu0 0
    %526 = vmatpush1.bf16.msra.mxu0 0
    %527 = vmatprep.subr.bf16.mxu0 0
    %528 = vmatpush1.bf16.msra.mxu0 0
    %529 = vmatprep.subr.bf16.mxu0 0
    %530 = vmatpush1.bf16.msra.mxu0 0
    %531 = vmatprep.subr.bf16.mxu0 0
    %532 = vmatpush1.bf16.msra.mxu0 %v515
    %533 = vmatprep.subr.bf16.mxu0 0
    %534 = vmatpush1.bf16.msra.mxu0 %v513
    %535 = vmatprep.subr.bf16.mxu0 0
    %536 = vmatpush1.bf16.msra.mxu0 %v511
    %537 = vmatprep.subr.bf16.mxu0 0
    %538 = vmatpush1.bf16.msra.mxu0 %v509
    %539 = vmatprep.subr.bf16.mxu0 0
    %540 = vmatpush2.bf16.msra.mxu0 0
    %541 = vmatprep.subr.bf16.mxu0 0
    %542 = vmatpush2.bf16.msra.mxu0 0
    %543 = vmatprep.subr.bf16.mxu0 0
    %544 = vmatpush2.bf16.msra.mxu0 0
    %545 = vmatprep.subr.bf16.mxu0 0
    %546 = vmatpush2.bf16.msra.mxu0 0
    %547 = vmatprep.subr.bf16.mxu0 0
    %548 = vmatpush2.bf16.msra.mxu0 0
    %549 = vmatprep.subr.bf16.mxu0 0
    %550 = vmatpush2.bf16.msra.mxu0 0
    %551 = vmatprep.subr.bf16.mxu0 0
    %552 = vmatpush2.bf16.msra.mxu0 0
    %553 = vmatprep.subr.bf16.mxu0 0
    %554 = vmatpush2.bf16.msra.mxu0 0
    %555 = vmatprep.mubr.bf16.mxu0 0
    %556 = vmatmul.mubr.bf16.gmra.mxu0 %v521
    %v557 = vpop.f32.mrf.mxu0
    %v558 = vadd.f32 0.0, %v557
    %v559 = vpop.f32.mrf.mxu0
    %v560 = vpop.f32.mrf.mxu0
    %v561 = vadd.f32 0.0, %v560
    %v562 = vpop.f32.mrf.mxu0
    %563 = vdwg.mxu0
    %v564 = vadd.f32 %v488, %v558
    %v565 = vadd.f32 %v489, %v561
    %v566 = vsel %vm502, %v564, -inf
    %567 = vmax.xlane.f32.xlu0 %v566
    %v568 = vpop.xlane.xlu0 %567
    %v569 = vsel %vm502, %v565, -inf
    %570 = vmax.xlane.f32.xlu0 %v569
    %v571 = vpop.xlane.xlu0 %570
    %v572 = vsub.f32 %v564, %v568
    %v573 = vsub.f32 %v565, %v571
    %v574 = vmul.f32 %v572, 1.442695
    %v575 = vpow.pop %v574
    %v576 = vmul.f32 %v573, 1.442695
    %v577 = vpow.pop %v576
    %v578 = vpack.c.bf16 %v577, %v575
    %v581 = vunpack.c.l.b16 %v265
    %v582 = vunpack.c.l.b16 %v266
    %v583 = vpack.c.b16 %v582, %v581
    %v586 = vsel %vm502, %v578, 0
    %588 = vmatprep.subr.bf16.mxu0 0
    %589 = vmatpush1.bf16.msra.mxu0 0
    %590 = vmatprep.subr.bf16.mxu0 0
    %591 = vmatpush1.bf16.msra.mxu0 0
    %592 = vmatprep.subr.bf16.mxu0 0
    %593 = vmatpush1.bf16.msra.mxu0 0
    %594 = vmatprep.subr.bf16.mxu0 0
    %595 = vmatpush1.bf16.msra.mxu0 0
    %596 = vmatprep.subr.bf16.mxu0 0
    %597 = vmatpush1.bf16.msra.mxu0 0
    %598 = vmatprep.subr.bf16.mxu0 0
    %599 = vmatpush1.bf16.msra.mxu0 0
    %600 = vmatprep.subr.bf16.mxu0 0
    %601 = vmatpush1.bf16.msra.mxu0 0
    %602 = vmatprep.subr.bf16.mxu0 0
    %603 = vmatpush1.bf16.msra.mxu0 %v583
    %604 = vmatprep.subr.bf16.mxu0 0
    %605 = vmatpush2.bf16.msra.mxu0 0
    %606 = vmatprep.subr.bf16.mxu0 0
    %607 = vmatpush2.bf16.msra.mxu0 0
    %608 = vmatprep.subr.bf16.mxu0 0
    %609 = vmatpush2.bf16.msra.mxu0 0
    %610 = vmatprep.subr.bf16.mxu0 0
    %611 = vmatpush2.bf16.msra.mxu0 0
    %612 = vmatprep.subr.bf16.mxu0 0
    %613 = vmatpush2.bf16.msra.mxu0 0
    %614 = vmatprep.subr.bf16.mxu0 0
    %615 = vmatpush2.bf16.msra.mxu0 0
    %616 = vmatprep.subr.bf16.mxu0 0
    %617 = vmatpush2.bf16.msra.mxu0 0
    %618 = vmatprep.subr.bf16.mxu0 0
    %619 = vmatpush2.bf16.msra.mxu0 0
    %620 = vmatprep.mubr.bf16.mxu0 0
    %621 = vmatmul.mubr.bf16.gmra.mxu0 %v586
    %v622 = vpop.f32.mrf.mxu0
    %v623 = vadd.f32 0.0, %v622
    %v624 = vpop.f32.mrf.mxu0
    %v625 = vpop.f32.mrf.mxu0
    %v626 = vadd.f32 0.0, %v625
    %v627 = vpop.f32.mrf.mxu0
    %628 = vdwg.mxu0
    %631 = vrot.lane.b32.xlu0 %v255, 64
    %v632 = vpop.permute.xlu0 %631
    %633 = vrot.lane.b32.xlu0 %v256, 64
    %v634 = vpop.permute.xlu0 %633
    %v637 = vmul.f32 %v623, %v632
    %v638 = vmul.f32 %v626, %v634
    %v639 = vadd.f32 %v637, 0.0
    %v640 = vadd.f32 %v638, 0.0
    %v641 = vadd.f32 %v623, 0.0
    %v642 = vadd.f32 %v626, 0.0
    %643 = vrot.lane.b32.xlu0 %v583, 64
    %v644 = vpop.permute.xlu0 %643
    %646 = vmatprep.subr.bf16.mxu0 0
    %647 = vmatpush1.bf16.msra.mxu0 0
    %648 = vmatprep.subr.bf16.mxu0 0
    %649 = vmatpush1.bf16.msra.mxu0 0
    %650 = vmatprep.subr.bf16.mxu0 0
    %651 = vmatpush1.bf16.msra.mxu0 0
    %652 = vmatprep.subr.bf16.mxu0 0
    %653 = vmatpush1.bf16.msra.mxu0 0
    %654 = vmatprep.subr.bf16.mxu0 0
    %655 = vmatpush1.bf16.msra.mxu0 0
    %656 = vmatprep.subr.bf16.mxu0 0
    %657 = vmatpush1.bf16.msra.mxu0 0
    %658 = vmatprep.subr.bf16.mxu0 0
    %659 = vmatpush1.bf16.msra.mxu0 0
    %660 = vmatprep.subr.bf16.mxu0 0
    %661 = vmatpush1.bf16.msra.mxu0 %v644
    %662 = vmatprep.subr.bf16.mxu0 0
    %663 = vmatpush2.bf16.msra.mxu0 0
    %664 = vmatprep.subr.bf16.mxu0 0
    %665 = vmatpush2.bf16.msra.mxu0 0
    %666 = vmatprep.subr.bf16.mxu0 0
    %667 = vmatpush2.bf16.msra.mxu0 0
    %668 = vmatprep.subr.bf16.mxu0 0
    %669 = vmatpush2.bf16.msra.mxu0 0
    %670 = vmatprep.subr.bf16.mxu0 0
    %671 = vmatpush2.bf16.msra.mxu0 0
    %672 = vmatprep.subr.bf16.mxu0 0
    %673 = vmatpush2.bf16.msra.mxu0 0
    %674 = vmatprep.subr.bf16.mxu0 0
    %675 = vmatpush2.bf16.msra.mxu0 0
    %676 = vmatprep.subr.bf16.mxu0 0
    %677 = vmatpush2.bf16.msra.mxu0 0
    %678 = vmatprep.mubr.bf16.mxu0 0
    %679 = vmatmul.mubr.bf16.gmra.mxu0 %v586
    %v680 = vpop.f32.mrf.mxu0
    %v681 = vadd.f32 0.0, %v680
    %v682 = vpop.f32.mrf.mxu0
    %v683 = vpop.f32.mrf.mxu0
    %v684 = vadd.f32 0.0, %v683
    %v685 = vpop.f32.mrf.mxu0
    %686 = vdwg.mxu0
    %687 = vrot.lane.b32.xlu0 %v255, 48
    %v688 = vpop.permute.xlu0 %687
    %689 = vrot.lane.b32.xlu0 %v256, 48
    %v690 = vpop.permute.xlu0 %689
    %693 = vrot.lane.b32.xlu0 %v255, 112
    %v694 = vpop.permute.xlu0 %693
    %695 = vrot.lane.b32.xlu0 %v256, 112
    %v696 = vpop.permute.xlu0 %695
    %v699 = vsel %vm284, %v688, %v694
    %v700 = vsel %vm284, %v690, %v696
    %v701 = vmul.f32 %v681, %v699
    %v702 = vmul.f32 %v684, %v700
    %v703 = vadd.f32 %v639, %v701
    %v704 = vadd.f32 %v640, %v702
    %v705 = vadd.f32 %v641, %v681
    %v706 = vadd.f32 %v642, %v684
    %v707 = vunpack.c.h.b16 %v265
    %v708 = vunpack.c.h.b16 %v266
    %v709 = vpack.c.b16 %v708, %v707
    %711 = vmatprep.subr.bf16.mxu0 0
    %712 = vmatpush1.bf16.msra.mxu0 0
    %713 = vmatprep.subr.bf16.mxu0 0
    %714 = vmatpush1.bf16.msra.mxu0 0
    %715 = vmatprep.subr.bf16.mxu0 0
    %716 = vmatpush1.bf16.msra.mxu0 0
    %717 = vmatprep.subr.bf16.mxu0 0
    %718 = vmatpush1.bf16.msra.mxu0 0
    %719 = vmatprep.subr.bf16.mxu0 0
    %720 = vmatpush1.bf16.msra.mxu0 0
    %721 = vmatprep.subr.bf16.mxu0 0
    %722 = vmatpush1.bf16.msra.mxu0 0
    %723 = vmatprep.subr.bf16.mxu0 0
    %724 = vmatpush1.bf16.msra.mxu0 0
    %725 = vmatprep.subr.bf16.mxu0 0
    %726 = vmatpush1.bf16.msra.mxu0 %v709
    %727 = vmatprep.subr.bf16.mxu0 0
    %728 = vmatpush2.bf16.msra.mxu0 0
    %729 = vmatprep.subr.bf16.mxu0 0
    %730 = vmatpush2.bf16.msra.mxu0 0
    %731 = vmatprep.subr.bf16.mxu0 0
    %732 = vmatpush2.bf16.msra.mxu0 0
    %733 = vmatprep.subr.bf16.mxu0 0
    %734 = vmatpush2.bf16.msra.mxu0 0
    %735 = vmatprep.subr.bf16.mxu0 0
    %736 = vmatpush2.bf16.msra.mxu0 0
    %737 = vmatprep.subr.bf16.mxu0 0
    %738 = vmatpush2.bf16.msra.mxu0 0
    %739 = vmatprep.subr.bf16.mxu0 0
    %740 = vmatpush2.bf16.msra.mxu0 0
    %741 = vmatprep.subr.bf16.mxu0 0
    %742 = vmatpush2.bf16.msra.mxu0 0
    %743 = vmatprep.mubr.bf16.mxu0 0
    %744 = vmatmul.mubr.bf16.gmra.mxu0 %v586
    %v745 = vpop.f32.mrf.mxu0
    %v746 = vadd.f32 0.0, %v745
    %v747 = vpop.f32.mrf.mxu0
    %v748 = vpop.f32.mrf.mxu0
    %v749 = vadd.f32 0.0, %v748
    %v750 = vpop.f32.mrf.mxu0
    %751 = vdwg.mxu0
    %752 = vrot.lane.b32.xlu0 %v255, 32
    %v753 = vpop.permute.xlu0 %752
    %754 = vrot.lane.b32.xlu0 %v256, 32
    %v755 = vpop.permute.xlu0 %754
    %758 = vrot.lane.b32.xlu0 %v255, 96
    %v759 = vpop.permute.xlu0 %758
    %760 = vrot.lane.b32.xlu0 %v256, 96
    %v761 = vpop.permute.xlu0 %760
    %v764 = vsel %vm142, %v753, %v759
    %v765 = vsel %vm142, %v755, %v761
    %v766 = vmul.f32 %v746, %v764
    %v767 = vmul.f32 %v749, %v765
    %v768 = vadd.f32 %v703, %v766
    %v769 = vadd.f32 %v704, %v767
    %v770 = vadd.f32 %v705, %v746
    %v771 = vadd.f32 %v706, %v749
    %772 = vrot.lane.b32.xlu0 %v709, 64
    %v773 = vpop.permute.xlu0 %772
    %775 = vmatprep.subr.bf16.mxu0 0
    %776 = vmatpush1.bf16.msra.mxu0 0
    %777 = vmatprep.subr.bf16.mxu0 0
    %778 = vmatpush1.bf16.msra.mxu0 0
    %779 = vmatprep.subr.bf16.mxu0 0
    %780 = vmatpush1.bf16.msra.mxu0 0
    %781 = vmatprep.subr.bf16.mxu0 0
    %782 = vmatpush1.bf16.msra.mxu0 0
    %783 = vmatprep.subr.bf16.mxu0 0
    %784 = vmatpush1.bf16.msra.mxu0 0
    %785 = vmatprep.subr.bf16.mxu0 0
    %786 = vmatpush1.bf16.msra.mxu0 0
    %787 = vmatprep.subr.bf16.mxu0 0
    %788 = vmatpush1.bf16.msra.mxu0 0
    %789 = vmatprep.subr.bf16.mxu0 0
    %790 = vmatpush1.bf16.msra.mxu0 %v773
    %791 = vmatprep.subr.bf16.mxu0 0
    %792 = vmatpush2.bf16.msra.mxu0 0
    %793 = vmatprep.subr.bf16.mxu0 0
    %794 = vmatpush2.bf16.msra.mxu0 0
    %795 = vmatprep.subr.bf16.mxu0 0
    %796 = vmatpush2.bf16.msra.mxu0 0
    %797 = vmatprep.subr.bf16.mxu0 0
    %798 = vmatpush2.bf16.msra.mxu0 0
    %799 = vmatprep.subr.bf16.mxu0 0
    %800 = vmatpush2.bf16.msra.mxu0 0
    %801 = vmatprep.subr.bf16.mxu0 0
    %802 = vmatpush2.bf16.msra.mxu0 0
    %803 = vmatprep.subr.bf16.mxu0 0
    %804 = vmatpush2.bf16.msra.mxu0 0
    %805 = vmatprep.subr.bf16.mxu0 0
    %806 = vmatpush2.bf16.msra.mxu0 0
    %807 = vmatprep.mubr.bf16.mxu0 0
    %808 = vmatmul.mubr.bf16.gmra.mxu0 %v586
    %v809 = vpop.f32.mrf.mxu0
    %v810 = vadd.f32 0.0, %v809
    %v811 = vpop.f32.mrf.mxu0
    %v812 = vpop.f32.mrf.mxu0
    %v813 = vadd.f32 0.0, %v812
    %v814 = vpop.f32.mrf.mxu0
    %815 = vdwg.mxu0
    %816 = vrot.lane.b32.xlu0 %v255, 16
    %v817 = vpop.permute.xlu0 %816
    %818 = vrot.lane.b32.xlu0 %v256, 16
    %v819 = vpop.permute.xlu0 %818
    %822 = vrot.lane.b32.xlu0 %v255, 80
    %v823 = vpop.permute.xlu0 %822
    %824 = vrot.lane.b32.xlu0 %v256, 80
    %v825 = vpop.permute.xlu0 %824
    %v828 = vsel %vm502, %v817, %v823
    %v829 = vsel %vm502, %v819, %v825
    %v830 = vmul.f32 %v810, %v828
    %v831 = vmul.f32 %v813, %v829
    %v832 = vadd.f32 %v768, %v830
    %v833 = vadd.f32 %v769, %v831
    %v834 = vadd.f32 %v770, %v810
    %v835 = vadd.f32 %v771, %v813
    %v836 = vrcp.pop %v834
    %v837 = vrcp.pop %v835
    %v838 = vmul.f32 %v832, %v836
    %v839 = vmul.f32 %v833, %v837
    %v840 = vmax.f32 %v838, 0.0
    %v841 = vmax.f32 %v839, 0.0
    %842 = vst.msk [vmem:[#allocation13] sm:$0xff] %vm322, %v840
    %843 = vst.msk [vmem:[#allocation13 + $0x8] sm:$0xff] %vm322, %v841
    // Predicated region
    $region58: #{crosa_encoder.1} parent=1 // pred_check
      _
    $region59: #{crosa_encoder.1} parent=1 // pred_check_branch
      %845 = sbr.rel (0) target = $region61
    $region60: #{crosa_encoder.1} parent=1 // pred_region
      %s847 = ssub.s32 256, 256
      %848 = vsyncadd [#allocation4], %s847
      %s849 = sshll.u32 [#allocation13], 4
      %s850 = int_to_ptr.vmem [resolvable:$true] %s849
      %855 = dma.vmem_to_hbm [thread:$0]  %s850, 256, %s8, [#allocation4], 128, 128, 8
    $region61: #{crosa_encoder.1} parent=1 // pred_fallthru
      _
    // Predicated region
    $region62: #{crosa_encoder.1} parent=1 // pred_check
      _
    $region63: #{crosa_encoder.1} parent=1 // pred_check_branch
      %857 = sbr.rel (0) target = $region65
    $region64: #{crosa_encoder.1} parent=1 // pred_region
      %858 = dma.done [#allocation4], 256
    $region65: #{crosa_encoder.1} parent=1 // pred_fallthru
      _
    %859 = vsyncpa [#allocation3], 1
    %860 = vsyncpa [#allocation6], 1
    %861 = vsyncpa [#allocation9], 1
    %862 = vsyncpa [#allocation12], 1
    %863 = vsyncpa [#allocation4], 1

</llo_original>
